<compile_context>
chip_gen: v6e
topology: v6e:2x2x1
jax: 0.10.0
libtpu: 0.0.40
codegen_flags: <defaults>
</compile_context>

<pallas_src>
import jax
import jax.numpy as jnp
from jax import lax
from jax.experimental import pallas as pl
from jax.experimental.pallas import tpu as pltpu


# ---------------------------------------------------------------------------
# Fused kernel
# ---------------------------------------------------------------------------

def _make_cfe_kernel(H, W, Cin, KTAP, KPAD, L):
    """Fused conv3x3+BN+ReLU+conv1x1 for a fixed (H, W, Cin) and block width L."""
    HW = H * W
    pow2 = (W & (W - 1)) == 0 and (HW & (HW - 1)) == 0
    log2w = int(W).bit_length() - 1

    def kernel(x_ref, wenc_ref, wdec_ref, o_ref, stack_ref):
        # x_ref    : (Cin, L)     input slab, channels-first, batch in lanes
        # wenc_ref : (Cmid, KPAD) folded 3x3 weights | BN shift column | zeros
        # wdec_ref : (Cout, Cmid) 1x1 conv weights
        # o_ref    : (Cout, L)    output slab
        # stack_ref: (KPAD, L)    VMEM scratch: stacked shifted+masked taps
        x = x_ref[...]                                        # (Cin, L)

        # Boundary masks from a single (1, L) iota (broadcast in jnp.where).
        pos = lax.broadcasted_iota(jnp.int32, (1, L), 1)
        if pow2:
            col = pos & (W - 1)
            row = (pos & (HW - 1)) >> log2w
        else:
            col = pos % W
            row = (pos % HW) // W
        left_ok = col >= 1          # dx = -1
        right_ok = col <= W - 2     # dx = +1
        top_ok = row >= 1           # dy = -1 (also kills image-to-image wrap)
        bot_ok = row <= H - 2       # dy = +1

        # Build the (9*Cin, L) shifted+masked activation stack with XLU rolls.
        k = 0
        for dy in (-1, 0, 1):
            for dx in (-1, 0, 1):
                shift = (-(dy * W + dx)) % L                  # static
                xs = x if shift == 0 else pltpu.roll(x, shift=shift, axis=1)
                m = None
                if dx == -1:
                    m = left_ok
                elif dx == 1:
                    m = right_ok
                if dy == -1:
                    m = top_ok if m is None else (m & top_ok)
                elif dy == 1:
                    m = bot_ok if m is None else (m & bot_ok)
                if m is not None:
                    xs = jnp.where(m, xs, 0.0)
                stack_ref[k * Cin:(k + 1) * Cin, :] = xs
                k += 1

        # Row KTAP = ones (folded BN shift), rows KTAP+1..KPAD = zeros.
        tail = (lax.broadcasted_iota(jnp.int32, (KPAD - KTAP, L), 0) == 0
                ).astype(jnp.float32)
        stack_ref[KTAP:KPAD, :] = tail

        # Encoder: ONE stacked matmul (Cmid, KPAD) @ (KPAD, L), f32 accumulate,
        # bias already included via the ones row -> straight into ReLU.
        h = jnp.dot(wenc_ref[...], stack_ref[...],
                    preferred_element_type=jnp.float32)       # (Cmid, L)
        h = jnp.maximum(h, 0.0)

        # Decoder: 1x1 conv as a single matmul.
        y = jnp.dot(wdec_ref[...], h, preferred_element_type=jnp.float32)
        o_ref[...] = y.astype(o_ref.dtype)

    return kernel


# ---------------------------------------------------------------------------
# Wrapper
# ---------------------------------------------------------------------------

def _n_grid_steps(batch):
    """2 'parallel' steps on 2-TensorCore chips (v7x), else 1 (v5e/v6e)."""
    try:
        kind = jax.devices()[0].device_kind.lower()
    except Exception:
        kind = ""
    n_cores = 2 if "v7" in kind else 1
    if n_cores > 1 and batch % n_cores == 0:
        return n_cores
    return 1


def color_feature_extractor(x_nchw, params):
    """x_nchw: (N, Cin, H, W) f32 -> (N, Cout, H, W) f32."""
    N, Cin, H, W = x_nchw.shape
    HW = H * W

    w1 = params["conv1_w"]          # (Cmid, Cin, 3, 3), no bias
    w2 = params["conv2_w"]          # (Cout, Cmid, 1, 1), no bias
    gamma = params["bn_gamma"]
    beta = params["bn_beta"]
    mean = params["bn_mean"]
    var = params["bn_var"]
    eps = params["bn_eps"]
    Cmid = w1.shape[0]
    Cout = w2.shape[0]

    KTAP = 9 * Cin                              # stacked contraction (taps)
    KPAD = ((KTAP + 1 + 7) // 8) * 8            # + bias row, sublane-padded

    # Fold BN (inference) into the conv: BN(conv(x)) = (scale*W)*x + shift.
    scale = gamma * lax.rsqrt(var + eps)                     # (Cmid,)
    shift = beta - mean * scale                              # (Cmid,)
    w3f = w1 * scale[:, None, None, None]                    # (Cmid, Cin, 3, 3)
    wstack = jnp.transpose(w3f, (0, 2, 3, 1)).reshape(Cmid, KTAP)  # k*Cin+ci
    wenc = jnp.zeros((Cmid, KPAD), jnp.float32)
    wenc = wenc.at[:, :KTAP].set(wstack).at[:, KTAP].set(shift)
    wdec = w2.reshape(Cout, Cmid)

    # Channels-first with the batch packed into the lane dimension.
    x2d = x_nchw.reshape(N, Cin, HW).transpose(1, 0, 2).reshape(Cin, N * HW)

    n_steps = _n_grid_steps(N)
    BHW = (N // n_steps) * HW

    kernel = _make_cfe_kernel(H, W, Cin, KTAP, KPAD, BHW)
    flops = 2 * N * HW * (KTAP * Cmid + Cmid * Cout)
    bytes_accessed = 4 * (N * HW * (Cin + Cout) + Cmid * KPAD + Cout * Cmid)

    out2d = pl.pallas_call(
        kernel,
        out_shape=jax.ShapeDtypeStruct((Cout, N * HW), x_nchw.dtype),
        grid=(n_steps,),
        in_specs=[
            pl.BlockSpec((Cin, BHW), lambda s: (0, s)),
            pl.BlockSpec((Cmid, KPAD), lambda s: (0, 0)),
            pl.BlockSpec((Cout, Cmid), lambda s: (0, 0)),
        ],
        out_specs=pl.BlockSpec((Cout, BHW), lambda s: (0, s)),
        scratch_shapes=[pltpu.VMEM((KPAD, BHW), jnp.float32)],
        compiler_params=pltpu.CompilerParams(
            dimension_semantics=("parallel",),
            # Actual footprint is a few hundred KiB; 16 MiB stays well under
            # every generation's budget (incl. v7x's 64 MiB physical VMEM).
            vmem_limit_bytes=16 * 1024 * 1024),
        cost_estimate=pl.CostEstimate(
            flops=flops, transcendentals=0, bytes_accessed=bytes_accessed),
    )(x2d, wenc, wdec)

    return out2d.reshape(Cout, N, HW).transpose(1, 0, 2).reshape(N, Cout, H, W)


# ---------------------------------------------------------------------------
# Pure-JAX reference for a sanity check
# ---------------------------------------------------------------------------

def reference(x, params):
    w1 = params["conv1_w"]
    w2 = params["conv2_w"]
    gamma = params["bn_gamma"]
    beta = params["bn_beta"]
    mean = params["bn_mean"]
    var = params["bn_var"]
    eps = params["bn_eps"]

    y = lax.conv_general_dilated(
        x, w1, window_strides=(1, 1), padding=((1, 1), (1, 1)),
        dimension_numbers=("NCHW", "OIHW", "NCHW"))
    scale = gamma / jnp.sqrt(var + eps)
    y = y * scale[None, :, None, None] + (beta - mean * scale)[None, :, None, None]
    y = jnp.maximum(y, 0.0)
    out = lax.conv_general_dilated(
        y, w2, window_strides=(1, 1), padding=((0, 0), (0, 0)),
        dimension_numbers=("NCHW", "OIHW", "NCHW"))
    return out


# ---------------------------------------------------------------------------
# Main
# ---------------------------------------------------------------------------

if __name__ == "__main__":
    N, CIN, H, W = 2, 4, 16, 16
    CMID, COUT = 8, 4            # encoder mid-channels fixed at 8 by the module

    key = jax.random.PRNGKey(0)
    kx, k1, k2, kg, kb, km, kv = jax.random.split(key, 7)

    x = jax.random.normal(kx, (N, CIN, H, W), dtype=jnp.float32)
    params = {
        "conv1_w": 0.2 * jax.random.normal(k1, (CMID, CIN, 3, 3), jnp.float32),
        "conv2_w": 0.2 * jax.random.normal(k2, (COUT, CMID, 1, 1), jnp.float32),
        "bn_gamma": 1.0 + 0.1 * jax.random.normal(kg, (CMID,), jnp.float32),
        "bn_beta": 0.1 * jax.random.normal(kb, (CMID,), jnp.float32),
        "bn_mean": 0.1 * jax.random.normal(km, (CMID,), jnp.float32),
        "bn_var": 1.0 + 0.1 * jax.random.uniform(kv, (CMID,), jnp.float32),
        "bn_eps": 1e-5,
    }

    fwd = jax.jit(color_feature_extractor)
    out = jax.block_until_ready(fwd(x, params))
    assert out.shape == (N, COUT, H, W), out.shape

    ref = jax.block_until_ready(reference(x, params))
    assert jnp.allclose(out, ref, rtol=1e-3, atol=1e-3), (
        float(jnp.max(jnp.abs(out - ref))))

    print("KERNEL_OK")
</pallas_src>

<mosaic_0001>
module attributes {stable_mosaic.version = 11 : i64} {
  func.func @kernel(%arg0: i32, %arg1: memref<4x512xf32, #tpu.memory_space<vmem>>, %arg2: memref<8x40xf32, #tpu.memory_space<vmem>>, %arg3: memref<4x8xf32, #tpu.memory_space<vmem>>, %arg4: memref<4x512xf32, #tpu.memory_space<vmem>>, %arg5: memref<40x512xf32, #tpu.memory_space<vmem>>) attributes {dimension_semantics = [#tpu.dimension_semantics<parallel>], iteration_bounds = array<i64: 1>, scalar_prefetch = 0 : i64, scratch_operands = 1 : i64, tpu.core_type = #tpu.core_type<tc>, window_params = [{transform_indices = @transform_0, window_bounds = array<i64: 4, 512>}, {pipeline_mode = #tpu.pipeline_mode<synchronous>, transform_indices = @transform_1, window_bounds = array<i64: 8, 40>}, {pipeline_mode = #tpu.pipeline_mode<synchronous>, transform_indices = @transform_2, window_bounds = array<i64: 4, 8>}, {transform_indices = @transform_3, window_bounds = array<i64: 4, 512>}]} {
    %c0 = arith.constant 0 : index
    %c0_0 = arith.constant 0 : index
    %0 = vector.load %arg1[%c0, %c0_0] : memref<4x512xf32, #tpu.memory_space<vmem>>, vector<4x512xf32>
    %1 = tpu.iota {dimensions = array<i32: 1>} : vector<1x512xi32>
    %c15_i32 = arith.constant 15 : i32
    %2 = vector.broadcast %c15_i32 : i32 to vector<1x512xi32>
    %3 = arith.andi %1, %2 : vector<1x512xi32>
    %c255_i32 = arith.constant 255 : i32
    %4 = vector.broadcast %c255_i32 : i32 to vector<1x512xi32>
    %5 = arith.andi %1, %4 : vector<1x512xi32>
    %c4_i32 = arith.constant 4 : i32
    %6 = vector.broadcast %c4_i32 : i32 to vector<1x512xi32>
    %7 = arith.shrsi %5, %6 : vector<1x512xi32>
    %c1_i32 = arith.constant 1 : i32
    %8 = vector.broadcast %c1_i32 : i32 to vector<1x512xi32>
    %9 = arith.cmpi sge, %3, %8 : vector<1x512xi32>
    %c14_i32 = arith.constant 14 : i32
    %10 = vector.broadcast %c14_i32 : i32 to vector<1x512xi32>
    %11 = arith.cmpi sle, %3, %10 : vector<1x512xi32>
    %c1_i32_1 = arith.constant 1 : i32
    %12 = vector.broadcast %c1_i32_1 : i32 to vector<1x512xi32>
    %13 = arith.cmpi sge, %7, %12 : vector<1x512xi32>
    %c14_i32_2 = arith.constant 14 : i32
    %14 = vector.broadcast %c14_i32_2 : i32 to vector<1x512xi32>
    %15 = arith.cmpi sle, %7, %14 : vector<1x512xi32>
    %c17_i32 = arith.constant 17 : i32
    %16 = tpu.dynamic_rotate %0 by %c17_i32 dim 1 : vector<4x512xf32>, i32 -> vector<4x512xf32>
    %17 = arith.andi %9, %13 : vector<1x512xi1>
    %cst = arith.constant 0.000000e+00 : f32
    %18 = vector.shape_cast %17 : vector<1x512xi1> to vector<1x512xi1>
    %19 = vector.broadcast %18 : vector<1x512xi1> to vector<4x512xi1>
    %20 = vector.broadcast %cst : f32 to vector<4x512xf32>
    %21 = arith.select %19, %16, %20 : vector<4x512xi1>, vector<4x512xf32>
    %c0_3 = arith.constant 0 : index
    %c0_4 = arith.constant 0 : index
    %22 = vector.load %arg5[%c0_3, %c0_4] : memref<40x512xf32, #tpu.memory_space<vmem>>, vector<4x512xf32>
    tpu.vector_store %arg5[%c0_3, %c0_4], %21 {strides = array<i32>} : memref<40x512xf32, #tpu.memory_space<vmem>>, vector<4x512xf32>,
    %c16_i32 = arith.constant 16 : i32
    %23 = tpu.dynamic_rotate %0 by %c16_i32 dim 1 : vector<4x512xf32>, i32 -> vector<4x512xf32>
    %cst_5 = arith.constant 0.000000e+00 : f32
    %24 = vector.shape_cast %13 : vector<1x512xi1> to vector<1x512xi1>
    %25 = vector.broadcast %24 : vector<1x512xi1> to vector<4x512xi1>
    %26 = vector.broadcast %cst_5 : f32 to vector<4x512xf32>
    %27 = arith.select %25, %23, %26 : vector<4x512xi1>, vector<4x512xf32>
    %c4 = arith.constant 4 : index
    %c0_6 = arith.constant 0 : index
    %28 = vector.load %arg5[%c4, %c0_6] : memref<40x512xf32, #tpu.memory_space<vmem>>, vector<4x512xf32>
    tpu.vector_store %arg5[%c4, %c0_6], %27 {strides = array<i32>} : memref<40x512xf32, #tpu.memory_space<vmem>>, vector<4x512xf32>,
    %c15_i32_7 = arith.constant 15 : i32
    %29 = tpu.dynamic_rotate %0 by %c15_i32_7 dim 1 : vector<4x512xf32>, i32 -> vector<4x512xf32>
    %30 = arith.andi %11, %13 : vector<1x512xi1>
    %cst_8 = arith.constant 0.000000e+00 : f32
    %31 = vector.shape_cast %30 : vector<1x512xi1> to vector<1x512xi1>
    %32 = vector.broadcast %31 : vector<1x512xi1> to vector<4x512xi1>
    %33 = vector.broadcast %cst_8 : f32 to vector<4x512xf32>
    %34 = arith.select %32, %29, %33 : vector<4x512xi1>, vector<4x512xf32>
    %c8 = arith.constant 8 : index
    %c0_9 = arith.constant 0 : index
    %35 = vector.load %arg5[%c8, %c0_9] : memref<40x512xf32, #tpu.memory_space<vmem>>, vector<4x512xf32>
    tpu.vector_store %arg5[%c8, %c0_9], %34 {strides = array<i32>} : memref<40x512xf32, #tpu.memory_space<vmem>>, vector<4x512xf32>,
    %c1_i32_10 = arith.constant 1 : i32
    %36 = tpu.dynamic_rotate %0 by %c1_i32_10 dim 1 : vector<4x512xf32>, i32 -> vector<4x512xf32>
    %cst_11 = arith.constant 0.000000e+00 : f32
    %37 = vector.shape_cast %9 : vector<1x512xi1> to vector<1x512xi1>
    %38 = vector.broadcast %37 : vector<1x512xi1> to vector<4x512xi1>
    %39 = vector.broadcast %cst_11 : f32 to vector<4x512xf32>
    %40 = arith.select %38, %36, %39 : vector<4x512xi1>, vector<4x512xf32>
    %c12 = arith.constant 12 : index
    %c0_12 = arith.constant 0 : index
    %41 = vector.load %arg5[%c12, %c0_12] : memref<40x512xf32, #tpu.memory_space<vmem>>, vector<4x512xf32>
    tpu.vector_store %arg5[%c12, %c0_12], %40 {strides = array<i32>} : memref<40x512xf32, #tpu.memory_space<vmem>>, vector<4x512xf32>,
    %c16 = arith.constant 16 : index
    %c0_13 = arith.constant 0 : index
    %42 = vector.load %arg5[%c16, %c0_13] : memref<40x512xf32, #tpu.memory_space<vmem>>, vector<4x512xf32>
    tpu.vector_store %arg5[%c16, %c0_13], %0 {strides = array<i32>} : memref<40x512xf32, #tpu.memory_space<vmem>>, vector<4x512xf32>,
    %c511_i32 = arith.constant 511 : i32
    %43 = tpu.dynamic_rotate %0 by %c511_i32 dim 1 : vector<4x512xf32>, i32 -> vector<4x512xf32>
    %cst_14 = arith.constant 0.000000e+00 : f32
    %44 = vector.shape_cast %11 : vector<1x512xi1> to vector<1x512xi1>
    %45 = vector.broadcast %44 : vector<1x512xi1> to vector<4x512xi1>
    %46 = vector.broadcast %cst_14 : f32 to vector<4x512xf32>
    %47 = arith.select %45, %43, %46 : vector<4x512xi1>, vector<4x512xf32>
    %c20 = arith.constant 20 : index
    %c0_15 = arith.constant 0 : index
    %48 = vector.load %arg5[%c20, %c0_15] : memref<40x512xf32, #tpu.memory_space<vmem>>, vector<4x512xf32>
    tpu.vector_store %arg5[%c20, %c0_15], %47 {strides = array<i32>} : memref<40x512xf32, #tpu.memory_space<vmem>>, vector<4x512xf32>,
    %c497_i32 = arith.constant 497 : i32
    %49 = tpu.dynamic_rotate %0 by %c497_i32 dim 1 : vector<4x512xf32>, i32 -> vector<4x512xf32>
    %50 = arith.andi %9, %15 : vector<1x512xi1>
    %cst_16 = arith.constant 0.000000e+00 : f32
    %51 = vector.shape_cast %50 : vector<1x512xi1> to vector<1x512xi1>
    %52 = vector.broadcast %51 : vector<1x512xi1> to vector<4x512xi1>
    %53 = vector.broadcast %cst_16 : f32 to vector<4x512xf32>
    %54 = arith.select %52, %49, %53 : vector<4x512xi1>, vector<4x512xf32>
    %c24 = arith.constant 24 : index
    %c0_17 = arith.constant 0 : index
    %55 = vector.load %arg5[%c24, %c0_17] : memref<40x512xf32, #tpu.memory_space<vmem>>, vector<4x512xf32>
    tpu.vector_store %arg5[%c24, %c0_17], %54 {strides = array<i32>} : memref<40x512xf32, #tpu.memory_space<vmem>>, vector<4x512xf32>,
    %c496_i32 = arith.constant 496 : i32
    %56 = tpu.dynamic_rotate %0 by %c496_i32 dim 1 : vector<4x512xf32>, i32 -> vector<4x512xf32>
    %cst_18 = arith.constant 0.000000e+00 : f32
    %57 = vector.shape_cast %15 : vector<1x512xi1> to vector<1x512xi1>
    %58 = vector.broadcast %57 : vector<1x512xi1> to vector<4x512xi1>
    %59 = vector.broadcast %cst_18 : f32 to vector<4x512xf32>
    %60 = arith.select %58, %56, %59 : vector<4x512xi1>, vector<4x512xf32>
    %c28 = arith.constant 28 : index
    %c0_19 = arith.constant 0 : index
    %61 = vector.load %arg5[%c28, %c0_19] : memref<40x512xf32, #tpu.memory_space<vmem>>, vector<4x512xf32>
    tpu.vector_store %arg5[%c28, %c0_19], %60 {strides = array<i32>} : memref<40x512xf32, #tpu.memory_space<vmem>>, vector<4x512xf32>,
    %c495_i32 = arith.constant 495 : i32
    %62 = tpu.dynamic_rotate %0 by %c495_i32 dim 1 : vector<4x512xf32>, i32 -> vector<4x512xf32>
    %63 = arith.andi %11, %15 : vector<1x512xi1>
    %cst_20 = arith.constant 0.000000e+00 : f32
    %64 = vector.shape_cast %63 : vector<1x512xi1> to vector<1x512xi1>
    %65 = vector.broadcast %64 : vector<1x512xi1> to vector<4x512xi1>
    %66 = vector.broadcast %cst_20 : f32 to vector<4x512xf32>
    %67 = arith.select %65, %62, %66 : vector<4x512xi1>, vector<4x512xf32>
    %c32 = arith.constant 32 : index
    %c0_21 = arith.constant 0 : index
    %68 = vector.load %arg5[%c32, %c0_21] : memref<40x512xf32, #tpu.memory_space<vmem>>, vector<4x512xf32>
    tpu.vector_store %arg5[%c32, %c0_21], %67 {strides = array<i32>} : memref<40x512xf32, #tpu.memory_space<vmem>>, vector<4x512xf32>,
    %69 = tpu.iota {dimensions = array<i32: 0>} : vector<4x512xi32>
    %c0_i32 = arith.constant 0 : i32
    %70 = vector.broadcast %c0_i32 : i32 to vector<4x512xi32>
    %71 = arith.cmpi eq, %69, %70 : vector<4x512xi32>
    %72 = arith.extui %71 : vector<4x512xi1> to vector<4x512xi32>
    %73 = arith.sitofp %72 : vector<4x512xi32> to vector<4x512xf32>
    %c36 = arith.constant 36 : index
    %c0_22 = arith.constant 0 : index
    %74 = vector.load %arg5[%c36, %c0_22] : memref<40x512xf32, #tpu.memory_space<vmem>>, vector<4x512xf32>
    tpu.vector_store %arg5[%c36, %c0_22], %73 {strides = array<i32>} : memref<40x512xf32, #tpu.memory_space<vmem>>, vector<4x512xf32>,
    %c0_23 = arith.constant 0 : index
    %c0_24 = arith.constant 0 : index
    %75 = vector.load %arg2[%c0_23, %c0_24] : memref<8x40xf32, #tpu.memory_space<vmem>>, vector<8x40xf32>
    %c0_25 = arith.constant 0 : index
    %c0_26 = arith.constant 0 : index
    %76 = vector.load %arg5[%c0_25, %c0_26] : memref<40x512xf32, #tpu.memory_space<vmem>>, vector<40x512xf32>
    %cst_27 = arith.constant dense<0.000000e+00> : vector<8x512xf32>
    %77 = tpu.matmul %75, %76, %cst_27 {dimension_numbers = #tpu.dot_dimension_numbers<[1], [0], [0], [1], [0, 0, 1, 1], [], []>} : vector<8x40xf32>, vector<40x512xf32>, vector<8x512xf32> -> vector<8x512xf32>
    %cst_28 = arith.constant 0.000000e+00 : f32
    %78 = vector.broadcast %cst_28 : f32 to vector<8x512xf32>
    %79 = arith.maximumf %77, %78 : vector<8x512xf32>
    %c0_29 = arith.constant 0 : index
    %c0_30 = arith.constant 0 : index
    %80 = vector.load %arg3[%c0_29, %c0_30] : memref<4x8xf32, #tpu.memory_space<vmem>>, vector<4x8xf32>
    %cst_31 = arith.constant dense<0.000000e+00> : vector<4x512xf32>
    %81 = tpu.matmul %80, %79, %cst_31 {dimension_numbers = #tpu.dot_dimension_numbers<[1], [0], [0], [1], [0, 0, 1, 1], [], []>} : vector<4x8xf32>, vector<8x512xf32>, vector<4x512xf32> -> vector<4x512xf32>
    %c0_32 = arith.constant 0 : index
    %c0_33 = arith.constant 0 : index
    %82 = vector.load %arg4[%c0_32, %c0_33] : memref<4x512xf32, #tpu.memory_space<vmem>>, vector<4x512xf32>
    tpu.vector_store %arg4[%c0_32, %c0_33], %81 {strides = array<i32>} : memref<4x512xf32, #tpu.memory_space<vmem>>, vector<4x512xf32>,
    return
  }
  func.func @transform_0(%arg0: i32) -> (i32, i32) {
    %c0_i32 = arith.constant 0 : i32
    %c0_i32_0 = arith.constant 0 : i32
    return %c0_i32, %arg0 : i32, i32
  }
  func.func @transform_1(%arg0: i32) -> (i32, i32) {
    %c0_i32 = arith.constant 0 : i32
    %c0_i32_0 = arith.constant 0 : i32
    %c0_i32_1 = arith.constant 0 : i32
    return %c0_i32, %c0_i32_0 : i32, i32
  }
  func.func @transform_2(%arg0: i32) -> (i32, i32) {
    %c0_i32 = arith.constant 0 : i32
    %c0_i32_0 = arith.constant 0 : i32
    %c0_i32_1 = arith.constant 0 : i32
    return %c0_i32, %c0_i32_0 : i32, i32
  }
  func.func @transform_3(%arg0: i32) -> (i32, i32) {
    %c0_i32 = arith.constant 0 : i32
    %c0_i32_0 = arith.constant 0 : i32
    return %c0_i32, %arg0 : i32, i32
  }
}

</mosaic_0001>

<llo_original>
// kernel: color_feature_extractor.1
$region0: #{color_feature_extractor.1}
  #allocation0 [shape = 'u32[]', space=smem, size = 0x4, offset = 0x4, fixed_abs, tag = 'smem constant byte address 0x4 - core index']
  #allocation1 [shape = 'u32[144,128]{1,0:T(1,128)}', space=vmem, size = 0x12000, scoped, tag = 'internal scratch']
  #allocation2 [shape = 'f32[40,512]{1,0:T(8,128)}', space=vmem, size = 0x14000, scoped, tag = 'scratch operand']
  %s0 = inlined_call_operand.vmem [shape: f32[4,512], index: 0, kind: input, shape index: {}]
  %s1 = inlined_call_operand.vmem [shape: f32[8,40], index: 1, kind: input, shape index: {}]
  %s2 = inlined_call_operand.vmem [shape: f32[4,8], index: 2, kind: input, shape index: {}]
  %s3 = inlined_call_operand.vmem [shape: f32[4,512], index: 3, kind: output, shape index: {}]
  %s4 = sld [smem:[#allocation0]]
  $region22: #{color_feature_extractor.1} parent=0
    _
  %s6 = ssub.s32 1, %s4
  %s7 = scalar_select 0, %s6, %s4
  // Predicated region
  $region2: #{color_feature_extractor.1} parent=0 // pred_check
    _
  $region3: #{color_feature_extractor.1} parent=0 // pred_check_branch
    %9 = sbr.rel (0) target = $region5
  $region4: #{color_feature_extractor.1} parent=0 // pred_region
    _
  $region5: #{color_feature_extractor.1} parent=0 // pred_fallthru
    _
  // Predicated region
  $region6: #{color_feature_extractor.1} parent=0 // pred_check
    _
  $region7: #{color_feature_extractor.1} parent=0 // pred_check_branch
    %11 = sbr.rel (0) target = $region9
  $region8: #{color_feature_extractor.1} parent=0 // pred_region
    _
  $region9: #{color_feature_extractor.1} parent=0 // pred_fallthru
    _
  // Predicated region
  $region10: #{color_feature_extractor.1} parent=0 // pred_check
    _
  $region11: #{color_feature_extractor.1} parent=0 // pred_check_branch
    %13 = sbr.rel (0) target = $region13
  $region12: #{color_feature_extractor.1} parent=0 // pred_region
    _
  $region13: #{color_feature_extractor.1} parent=0 // pred_fallthru
    _
  %v14 = vld [vmem:[%s0] sm:$0xff]
  %v15 = vld [vmem:[%s0 + $0x8] sm:$0xff]
  %v16 = vlaneseq
  %v17 = vand.u32 %v16, 127
  %v18 = vadd.s32 %v17, 128
  %v19 = vadd.s32 %v17, 256
  %v20 = vadd.s32 %v17, 384
  %v21 = vand.u32 %v17, 15
  %v22 = vand.u32 %v18, 15
  %v23 = vand.u32 %v19, 15
  %v24 = vand.u32 %v20, 15
  %v25 = vand.u32 %v17, 255
  %v26 = vand.u32 %v18, 255
  %v27 = vand.u32 %v19, 255
  %v28 = vand.u32 %v20, 255
  %v29 = vshra.s32 %v25, 4
  %v30 = vshra.s32 %v26, 4
  %v31 = vshra.s32 %v27, 4
  %v32 = vshra.s32 %v28, 4
  %vm33 = vcmp.ge.s32.totalorder %v21, 1
  %vm34 = vcmp.ge.s32.totalorder %v22, 1
  %vm35 = vcmp.ge.s32.totalorder %v23, 1
  %vm36 = vcmp.ge.s32.totalorder %v24, 1
  %vm37 = vcmp.le.s32.totalorder %v21, 14
  %vm38 = vcmp.le.s32.totalorder %v22, 14
  %vm39 = vcmp.le.s32.totalorder %v23, 14
  %vm40 = vcmp.le.s32.totalorder %v24, 14
  %vm41 = vcmp.ge.s32.totalorder %v29, 1
  %vm42 = vcmp.ge.s32.totalorder %v30, 1
  %vm43 = vcmp.ge.s32.totalorder %v31, 1
  %vm44 = vcmp.ge.s32.totalorder %v32, 1
  %vm45 = vcmp.le.s32.totalorder %v29, 14
  %vm46 = vcmp.le.s32.totalorder %v30, 14
  %vm47 = vcmp.le.s32.totalorder %v31, 14
  %vm48 = vcmp.le.s32.totalorder %v32, 14
  %v51 = vcombine.high %v14, %v14
  %v52 = vcombine.high %v15, %v15
  %55 = vrot.lane.b32.xlu0 %v14, 17
  %v56 = vpop.permute.xlu0 %55
  %57 = vrot.lane.b32.xlu0 %v51, 17
  %v58 = vpop.permute.xlu0 %57
  %59 = vrot.lane.b32.xlu0 %v15, 17
  %v60 = vpop.permute.xlu0 %59
  %61 = vrot.lane.b32.xlu0 %v52, 17
  %v62 = vpop.permute.xlu0 %61
  %vm63 = vcmp.lt.s32.totalorder %v17, 17
  %v64 = vsel %vm63, %v60, %v62
  %v65 = vsel %vm63, %v58, %v60
  %v66 = vsel %vm63, %v56, %v58
  %v67 = vsel %vm63, %v62, %v56
  %vm68 = vmand %vm33, %vm41
  %vm69 = vmand %vm34, %vm42
  %vm70 = vmand %vm35, %vm43
  %vm71 = vmand %vm36, %vm44
  %v72 = vsel %vm68, 1, 0
  %v73 = vsel %vm69, 1, 0
  %v74 = vsel %vm70, 1, 0
  %v75 = vsel %vm71, 1, 0
  %vm76 = vcmp.eq.s32.totalorder %v72, 1
  %vm77 = vcmp.eq.s32.totalorder %v73, 1
  %vm78 = vcmp.eq.s32.totalorder %v74, 1
  %vm79 = vcmp.eq.s32.totalorder %v75, 1
  %v80 = vsel %vm76, %v67, 0.0
  %v81 = vsel %vm77, %v66, 0.0
  %v82 = vsel %vm78, %v65, 0.0
  %v83 = vsel %vm79, %v64, 0.0
  %84 = vst [vmem:[#allocation2] sm:$0xf] %v80
  %85 = vst [vmem:[#allocation2 + $0x8] sm:$0xf] %v81
  %86 = vst [vmem:[#allocation2 + $0x10] sm:$0xf] %v82
  %87 = vst [vmem:[#allocation2 + $0x18] sm:$0xf] %v83
  %88 = vrot.lane.b32.xlu0 %v14, 16
  %v89 = vpop.permute.xlu0 %88
  %90 = vrot.lane.b32.xlu0 %v51, 16
  %v91 = vpop.permute.xlu0 %90
  %92 = vrot.lane.b32.xlu0 %v15, 16
  %v93 = vpop.permute.xlu0 %92
  %94 = vrot.lane.b32.xlu0 %v52, 16
  %v95 = vpop.permute.xlu0 %94
  %vm96 = vcmp.lt.s32.totalorder %v17, 16
  %v97 = vsel %vm96, %v93, %v95
  %v98 = vsel %vm96, %v91, %v93
  %v99 = vsel %vm96, %v89, %v91
  %v100 = vsel %vm96, %v95, %v89
  %v101 = vsel %vm41, 1, 0
  %v102 = vsel %vm42, 1, 0
  %v103 = vsel %vm43, 1, 0
  %v104 = vsel %vm44, 1, 0
  %vm105 = vcmp.eq.s32.totalorder %v101, 1
  %vm106 = vcmp.eq.s32.totalorder %v102, 1
  %vm107 = vcmp.eq.s32.totalorder %v103, 1
  %vm108 = vcmp.eq.s32.totalorder %v104, 1
  %v109 = vsel %vm105, %v100, 0.0
  %v110 = vsel %vm106, %v99, 0.0
  %v111 = vsel %vm107, %v98, 0.0
  %v112 = vsel %vm108, %v97, 0.0
  %v117 = vrot.slane %v109, 4
  %v118 = vrot.slane %v110, 4
  %v119 = vrot.slane %v111, 4
  %v120 = vrot.slane %v112, 4
  %125 = vst [vmem:[#allocation2] sm:$0xf0] %v117
  %126 = vst [vmem:[#allocation2 + $0x8] sm:$0xf0] %v118
  %127 = vst [vmem:[#allocation2 + $0x10] sm:$0xf0] %v119
  %128 = vst [vmem:[#allocation2 + $0x18] sm:$0xf0] %v120
  %129 = vrot.lane.b32.xlu0 %v14, 15
  %v130 = vpop.permute.xlu0 %129
  %131 = vrot.lane.b32.xlu0 %v51, 15
  %v132 = vpop.permute.xlu0 %131
  %133 = vrot.lane.b32.xlu0 %v15, 15
  %v134 = vpop.permute.xlu0 %133
  %135 = vrot.lane.b32.xlu0 %v52, 15
  %v136 = vpop.permute.xlu0 %135
  %vm137 = vcmp.lt.s32.totalorder %v17, 15
  %v138 = vsel %vm137, %v134, %v136
  %v139 = vsel %vm137, %v132, %v134
  %v140 = vsel %vm137, %v130, %v132
  %v141 = vsel %vm137, %v136, %v130
  %vm142 = vmand %vm37, %vm41
  %vm143 = vmand %vm38, %vm42
  %vm144 = vmand %vm39, %vm43
  %vm145 = vmand %vm40, %vm44
  %v146 = vsel %vm142, 1, 0
  %v147 = vsel %vm143, 1, 0
  %v148 = vsel %vm144, 1, 0
  %v149 = vsel %vm145, 1, 0
  %vm150 = vcmp.eq.s32.totalorder %v146, 1
  %vm151 = vcmp.eq.s32.totalorder %v147, 1
  %vm152 = vcmp.eq.s32.totalorder %v148, 1
  %vm153 = vcmp.eq.s32.totalorder %v149, 1
  %v154 = vsel %vm150, %v141, 0.0
  %v155 = vsel %vm151, %v140, 0.0
  %v156 = vsel %vm152, %v139, 0.0
  %v157 = vsel %vm153, %v138, 0.0
  %158 = vst [vmem:[#allocation2 + $0x20] sm:$0xf] %v154
  %159 = vst [vmem:[#allocation2 + $0x28] sm:$0xf] %v155
  %160 = vst [vmem:[#allocation2 + $0x30] sm:$0xf] %v156
  %161 = vst [vmem:[#allocation2 + $0x38] sm:$0xf] %v157
  %162 = vrot.lane.b32.xlu0 %v14, 1
  %v163 = vpop.permute.xlu0 %162
  %164 = vrot.lane.b32.xlu0 %v51, 1
  %v165 = vpop.permute.xlu0 %164
  %166 = vrot.lane.b32.xlu0 %v15, 1
  %v167 = vpop.permute.xlu0 %166
  %168 = vrot.lane.b32.xlu0 %v52, 1
  %v169 = vpop.permute.xlu0 %168
  %vm170 = vcmp.lt.s32.totalorder %v17, 1
  %v171 = vsel %vm170, %v167, %v169
  %v172 = vsel %vm170, %v165, %v167
  %v173 = vsel %vm170, %v163, %v165
  %v174 = vsel %vm170, %v169, %v163
  %v175 = vsel %vm33, 1, 0
  %v176 = vsel %vm34, 1, 0
  %v177 = vsel %vm35, 1, 0
  %v178 = vsel %vm36, 1, 0
  %vm179 = vcmp.eq.s32.totalorder %v175, 1
  %vm180 = vcmp.eq.s32.totalorder %v176, 1
  %vm181 = vcmp.eq.s32.totalorder %v177, 1
  %vm182 = vcmp.eq.s32.totalorder %v178, 1
  %v183 = vsel %vm179, %v174, 0.0
  %v184 = vsel %vm180, %v173, 0.0
  %v185 = vsel %vm181, %v172, 0.0
  %v186 = vsel %vm182, %v171, 0.0
  %v191 = vrot.slane %v183, 4
  %v192 = vrot.slane %v184, 4
  %v193 = vrot.slane %v185, 4
  %v194 = vrot.slane %v186, 4
  %199 = vst [vmem:[#allocation2 + $0x20] sm:$0xf0] %v191
  %200 = vst [vmem:[#allocation2 + $0x28] sm:$0xf0] %v192
  %201 = vst [vmem:[#allocation2 + $0x30] sm:$0xf0] %v193
  %202 = vst [vmem:[#allocation2 + $0x38] sm:$0xf0] %v194
  %203 = vst [vmem:[#allocation2 + $0x40] sm:$0xf] %v14
  %204 = vst [vmem:[#allocation2 + $0x48] sm:$0xf] %v51
  %205 = vst [vmem:[#allocation2 + $0x50] sm:$0xf] %v15
  %206 = vst [vmem:[#allocation2 + $0x58] sm:$0xf] %v52
  %207 = vrot.lane.b32.xlu0 %v14, 127
  %v208 = vpop.permute.xlu0 %207
  %209 = vrot.lane.b32.xlu0 %v51, 127
  %v210 = vpop.permute.xlu0 %209
  %211 = vrot.lane.b32.xlu0 %v15, 127
  %v212 = vpop.permute.xlu0 %211
  %213 = vrot.lane.b32.xlu0 %v52, 127
  %v214 = vpop.permute.xlu0 %213
  %vm215 = vcmp.lt.s32.totalorder %v17, 127
  %v216 = vsel %vm215, %v212, %v214
  %v217 = vsel %vm215, %v210, %v212
  %v218 = vsel %vm215, %v208, %v210
  %v219 = vsel %vm215, %v214, %v208
  %v220 = vsel %vm37, 1, 0
  %v221 = vsel %vm38, 1, 0
  %v222 = vsel %vm39, 1, 0
  %v223 = vsel %vm40, 1, 0
  %vm224 = vcmp.eq.s32.totalorder %v220, 1
  %vm225 = vcmp.eq.s32.totalorder %v221, 1
  %vm226 = vcmp.eq.s32.totalorder %v222, 1
  %vm227 = vcmp.eq.s32.totalorder %v223, 1
  %v228 = vsel %vm224, %v218, 0.0
  %v229 = vsel %vm225, %v217, 0.0
  %v230 = vsel %vm226, %v216, 0.0
  %v231 = vsel %vm227, %v219, 0.0
  %v236 = vrot.slane %v228, 4
  %v237 = vrot.slane %v229, 4
  %v238 = vrot.slane %v230, 4
  %v239 = vrot.slane %v231, 4
  %244 = vst [vmem:[#allocation2 + $0x40] sm:$0xf0] %v236
  %245 = vst [vmem:[#allocation2 + $0x48] sm:$0xf0] %v237
  %246 = vst [vmem:[#allocation2 + $0x50] sm:$0xf0] %v238
  %247 = vst [vmem:[#allocation2 + $0x58] sm:$0xf0] %v239
  %248 = vrot.lane.b32.xlu0 %v14, 113
  %v249 = vpop.permute.xlu0 %248
  %250 = vrot.lane.b32.xlu0 %v51, 113
  %v251 = vpop.permute.xlu0 %250
  %252 = vrot.lane.b32.xlu0 %v15, 113
  %v253 = vpop.permute.xlu0 %252
  %254 = vrot.lane.b32.xlu0 %v52, 113
  %v255 = vpop.permute.xlu0 %254
  %vm256 = vcmp.lt.s32.totalorder %v17, 113
  %v257 = vsel %vm256, %v253, %v255
  %v258 = vsel %vm256, %v251, %v253
  %v259 = vsel %vm256, %v249, %v251
  %v260 = vsel %vm256, %v255, %v249
  %vm261 = vmand %vm33, %vm45
  %vm262 = vmand %vm34, %vm46
  %vm263 = vmand %vm35, %vm47
  %vm264 = vmand %vm36, %vm48
  %v265 = vsel %vm261, 1, 0
  %v266 = vsel %vm262, 1, 0
  %v267 = vsel %vm263, 1, 0
  %v268 = vsel %vm264, 1, 0
  %vm269 = vcmp.eq.s32.totalorder %v265, 1
  %vm270 = vcmp.eq.s32.totalorder %v266, 1
  %vm271 = vcmp.eq.s32.totalorder %v267, 1
  %vm272 = vcmp.eq.s32.totalorder %v268, 1
  %v273 = vsel %vm269, %v259, 0.0
  %v274 = vsel %vm270, %v258, 0.0
  %v275 = vsel %vm271, %v257, 0.0
  %v276 = vsel %vm272, %v260, 0.0
  %277 = vst [vmem:[#allocation2 + $0x60] sm:$0xf] %v273
  %278 = vst [vmem:[#allocation2 + $0x68] sm:$0xf] %v274
  %279 = vst [vmem:[#allocation2 + $0x70] sm:$0xf] %v275
  %280 = vst [vmem:[#allocation2 + $0x78] sm:$0xf] %v276
  %281 = vrot.lane.b32.xlu0 %v14, 112
  %v282 = vpop.permute.xlu0 %281
  %283 = vrot.lane.b32.xlu0 %v51, 112
  %v284 = vpop.permute.xlu0 %283
  %285 = vrot.lane.b32.xlu0 %v15, 112
  %v286 = vpop.permute.xlu0 %285
  %287 = vrot.lane.b32.xlu0 %v52, 112
  %v288 = vpop.permute.xlu0 %287
  %vm289 = vcmp.lt.s32.totalorder %v17, 112
  %v290 = vsel %vm289, %v286, %v288
  %v291 = vsel %vm289, %v284, %v286
  %v292 = vsel %vm289, %v282, %v284
  %v293 = vsel %vm289, %v288, %v282
  %v294 = vsel %vm45, 1, 0
  %v295 = vsel %vm46, 1, 0
  %v296 = vsel %vm47, 1, 0
  %v297 = vsel %vm48, 1, 0
  %vm298 = vcmp.eq.s32.totalorder %v294, 1
  %vm299 = vcmp.eq.s32.totalorder %v295, 1
  %vm300 = vcmp.eq.s32.totalorder %v296, 1
  %vm301 = vcmp.eq.s32.totalorder %v297, 1
  %v302 = vsel %vm298, %v292, 0.0
  %v303 = vsel %vm299, %v291, 0.0
  %v304 = vsel %vm300, %v290, 0.0
  %v305 = vsel %vm301, %v293, 0.0
  %v310 = vrot.slane %v302, 4
  %v311 = vrot.slane %v303, 4
  %v312 = vrot.slane %v304, 4
  %v313 = vrot.slane %v305, 4
  %318 = vst [vmem:[#allocation2 + $0x60] sm:$0xf0] %v310
  %319 = vst [vmem:[#allocation2 + $0x68] sm:$0xf0] %v311
  %320 = vst [vmem:[#allocation2 + $0x70] sm:$0xf0] %v312
  %321 = vst [vmem:[#allocation2 + $0x78] sm:$0xf0] %v313
  %322 = vrot.lane.b32.xlu0 %v14, 111
  %v323 = vpop.permute.xlu0 %322
  %324 = vrot.lane.b32.xlu0 %v51, 111
  %v325 = vpop.permute.xlu0 %324
  %326 = vrot.lane.b32.xlu0 %v15, 111
  %v327 = vpop.permute.xlu0 %326
  %328 = vrot.lane.b32.xlu0 %v52, 111
  %v329 = vpop.permute.xlu0 %328
  %vm330 = vcmp.lt.s32.totalorder %v17, 111
  %v331 = vsel %vm330, %v327, %v329
  %v332 = vsel %vm330, %v325, %v327
  %v333 = vsel %vm330, %v323, %v325
  %v334 = vsel %vm330, %v329, %v323
  %vm335 = vmand %vm37, %vm45
  %vm336 = vmand %vm38, %vm46
  %vm337 = vmand %vm39, %vm47
  %vm338 = vmand %vm40, %vm48
  %v339 = vsel %vm335, 1, 0
  %v340 = vsel %vm336, 1, 0
  %v341 = vsel %vm337, 1, 0
  %v342 = vsel %vm338, 1, 0
  %vm343 = vcmp.eq.s32.totalorder %v339, 1
  %vm344 = vcmp.eq.s32.totalorder %v340, 1
  %vm345 = vcmp.eq.s32.totalorder %v341, 1
  %vm346 = vcmp.eq.s32.totalorder %v342, 1
  %v347 = vsel %vm343, %v333, 0.0
  %v348 = vsel %vm344, %v332, 0.0
  %v349 = vsel %vm345, %v331, 0.0
  %v350 = vsel %vm346, %v334, 0.0
  %351 = vst [vmem:[#allocation2 + $0x80] sm:$0xf] %v347
  %352 = vst [vmem:[#allocation2 + $0x88] sm:$0xf] %v348
  %353 = vst [vmem:[#allocation2 + $0x90] sm:$0xf] %v349
  %354 = vst [vmem:[#allocation2 + $0x98] sm:$0xf] %v350
  %v355 = vlaneseq
  %v356 = vshrl.u32 %v355, 7
  %vm357 = vcmp.eq.s32.totalorder %v356, 0
  %v358 = vsel %vm357, 1, 0
  %v359 = vcvt.s32.f32 %v358
  %v361 = vrot.slane %v359, 4
  %363 = vst [vmem:[#allocation2 + $0x80] sm:$0xf0] %v361
  %364 = vst [vmem:[#allocation2 + $0x88] sm:$0xf0] %v361
  %365 = vst [vmem:[#allocation2 + $0x90] sm:$0xf0] %v361
  %366 = vst [vmem:[#allocation2 + $0x98] sm:$0xf0] %v361
  %v367 = vld [vmem:[%s1] sm:$0xff]
  %v368 = vld [vmem:[#allocation2] sm:$0xff]
  %v369 = vld [vmem:[#allocation2 + $0x8] sm:$0xff]
  %v370 = vld [vmem:[#allocation2 + $0x10] sm:$0xff]
  %v371 = vld [vmem:[#allocation2 + $0x18] sm:$0xff]
  %v372 = vld [vmem:[#allocation2 + $0x20] sm:$0xff]
  %v373 = vld [vmem:[#allocation2 + $0x28] sm:$0xff]
  %v374 = vld [vmem:[#allocation2 + $0x30] sm:$0xff]
  %v375 = vld [vmem:[#allocation2 + $0x38] sm:$0xff]
  %v376 = vld [vmem:[#allocation2 + $0x40] sm:$0xff]
  %v377 = vld [vmem:[#allocation2 + $0x48] sm:$0xff]
  %v378 = vld [vmem:[#allocation2 + $0x50] sm:$0xff]
  %v379 = vld [vmem:[#allocation2 + $0x58] sm:$0xff]
  %v380 = vld [vmem:[#allocation2 + $0x60] sm:$0xff]
  %v381 = vld [vmem:[#allocation2 + $0x68] sm:$0xff]
  %v382 = vld [vmem:[#allocation2 + $0x70] sm:$0xff]
  %v383 = vld [vmem:[#allocation2 + $0x78] sm:$0xff]
  %v384 = vld [vmem:[#allocation2 + $0x80] sm:$0xff]
  %v385 = vld [vmem:[#allocation2 + $0x88] sm:$0xff]
  %v386 = vld [vmem:[#allocation2 + $0x90] sm:$0xff]
  %v387 = vld [vmem:[#allocation2 + $0x98] sm:$0xff]
  %vm388 = vcmask 326656
  %v390 = vsel %vm388, %v367, 0
  %392 = vmatprep.subr.mxu0 0.0
  %393 = vmatpush1.msra.mxu0 0.0
  %394 = vmatprep.subr.mxu0 0.0
  %395 = vmatpush1.msra.mxu0 0.0
  %396 = vmatprep.subr.mxu0 0.0
  %397 = vmatpush1.msra.mxu0 0.0
  %398 = vmatprep.subr.mxu0 0.0
  %399 = vmatpush1.msra.mxu0 0.0
  %400 = vmatprep.subr.mxu0 0.0
  %401 = vmatpush1.msra.mxu0 0.0
  %402 = vmatprep.subr.mxu0 0.0
  %403 = vmatpush1.msra.mxu0 0.0
  %404 = vmatprep.subr.mxu0 0.0
  %405 = vmatpush1.msra.mxu0 0.0
  %406 = vmatprep.subr.mxu0 0.0
  %407 = vmatpush1.msra.mxu0 0.0
  %408 = vmatprep.subr.mxu0 0.0
  %409 = vmatpush1.msra.mxu0 0.0
  %410 = vmatprep.subr.mxu0 0.0
  %411 = vmatpush1.msra.mxu0 0.0
  %412 = vmatprep.subr.mxu0 0.0
  %413 = vmatpush1.msra.mxu0 0.0
  %414 = vmatprep.subr.mxu0 %v385
  %415 = vmatpush1.msra.mxu0 %v384
  %416 = vmatprep.subr.mxu0 %v381
  %417 = vmatpush1.msra.mxu0 %v380
  %418 = vmatprep.subr.mxu0 %v377
  %419 = vmatpush1.msra.mxu0 %v376
  %420 = vmatprep.subr.mxu0 %v373
  %421 = vmatpush1.msra.mxu0 %v372
  %422 = vmatprep.subr.mxu0 %v369
  %423 = vmatpush1.msra.mxu0 %v368
  %424 = vmatprep.subr.mxu0 0.0
  %425 = vmatpush2.msra.mxu0 0.0
  %426 = vmatprep.subr.mxu0 0.0
  %427 = vmatpush2.msra.mxu0 0.0
  %428 = vmatprep.subr.mxu0 0.0
  %429 = vmatpush2.msra.mxu0 0.0
  %430 = vmatprep.subr.mxu0 0.0
  %431 = vmatpush2.msra.mxu0 0.0
  %432 = vmatprep.subr.mxu0 0.0
  %433 = vmatpush2.msra.mxu0 0.0
  %434 = vmatprep.subr.mxu0 0.0
  %435 = vmatpush2.msra.mxu0 0.0
  %436 = vmatprep.subr.mxu0 0.0
  %437 = vmatpush2.msra.mxu0 0.0
  %438 = vmatprep.subr.mxu0 0.0
  %439 = vmatpush2.msra.mxu0 0.0
  %440 = vmatprep.subr.mxu0 0.0
  %441 = vmatpush2.msra.mxu0 0.0
  %442 = vmatprep.subr.mxu0 0.0
  %443 = vmatpush2.msra.mxu0 0.0
  %444 = vmatprep.subr.mxu0 0.0
  %445 = vmatpush2.msra.mxu0 0.0
  %446 = vmatprep.subr.mxu0 0.0
  %447 = vmatpush2.msra.mxu0 0.0
  %448 = vmatprep.subr.mxu0 0.0
  %449 = vmatpush2.msra.mxu0 0.0
  %450 = vmatprep.subr.mxu0 0.0
  %451 = vmatpush2.msra.mxu0 0.0
  %452 = vmatprep.subr.mxu0 0.0
  %453 = vmatpush2.msra.mxu0 0.0
  %454 = vmatprep.subr.mxu0 0.0
  %455 = vmatpush2.msra.mxu0 0.0
  %456 = vmatprep.mubr.f32.mxu0 0.0
  %457 = vmatmul.mubr.f32.gmra.mxu0 %v390
  %v458 = vpop.f32.mrf.mxu0
  %v459 = vadd.f32 0.0, %v458
  %v460 = vpop.f32.mrf.mxu0
  %v461 = vadd.f32 0.0, %v460
  %462 = vdwg.mxu0
  %463 = vmatprep.subr.mxu0 0.0
  %464 = vmatpush1.msra.mxu0 0.0
  %465 = vmatprep.subr.mxu0 0.0
  %466 = vmatpush1.msra.mxu0 0.0
  %467 = vmatprep.subr.mxu0 0.0
  %468 = vmatpush1.msra.mxu0 0.0
  %469 = vmatprep.subr.mxu0 0.0
  %470 = vmatpush1.msra.mxu0 0.0
  %471 = vmatprep.subr.mxu0 0.0
  %472 = vmatpush1.msra.mxu0 0.0
  %473 = vmatprep.subr.mxu0 0.0
  %474 = vmatpush1.msra.mxu0 0.0
  %475 = vmatprep.subr.mxu0 0.0
  %476 = vmatpush1.msra.mxu0 0.0
  %477 = vmatprep.subr.mxu0 0.0
  %478 = vmatpush1.msra.mxu0 0.0
  %479 = vmatprep.subr.mxu0 0.0
  %480 = vmatpush1.msra.mxu0 0.0
  %481 = vmatprep.subr.mxu0 0.0
  %482 = vmatpush1.msra.mxu0 0.0
  %483 = vmatprep.subr.mxu0 0.0
  %484 = vmatpush1.msra.mxu0 0.0
  %485 = vmatprep.subr.mxu0 %v387
  %486 = vmatpush1.msra.mxu0 %v386
  %487 = vmatprep.subr.mxu0 %v383
  %488 = vmatpush1.msra.mxu0 %v382
  %489 = vmatprep.subr.mxu0 %v379
  %490 = vmatpush1.msra.mxu0 %v378
  %491 = vmatprep.subr.mxu0 %v375
  %492 = vmatpush1.msra.mxu0 %v374
  %493 = vmatprep.subr.mxu0 %v371
  %494 = vmatpush1.msra.mxu0 %v370
  %495 = vmatprep.subr.mxu0 0.0
  %496 = vmatpush2.msra.mxu0 0.0
  %497 = vmatprep.subr.mxu0 0.0
  %498 = vmatpush2.msra.mxu0 0.0
  %499 = vmatprep.subr.mxu0 0.0
  %500 = vmatpush2.msra.mxu0 0.0
  %501 = vmatprep.subr.mxu0 0.0
  %502 = vmatpush2.msra.mxu0 0.0
  %503 = vmatprep.subr.mxu0 0.0
  %504 = vmatpush2.msra.mxu0 0.0
  %505 = vmatprep.subr.mxu0 0.0
  %506 = vmatpush2.msra.mxu0 0.0
  %507 = vmatprep.subr.mxu0 0.0
  %508 = vmatpush2.msra.mxu0 0.0
  %509 = vmatprep.subr.mxu0 0.0
  %510 = vmatpush2.msra.mxu0 0.0
  %511 = vmatprep.subr.mxu0 0.0
  %512 = vmatpush2.msra.mxu0 0.0
  %513 = vmatprep.subr.mxu0 0.0
  %514 = vmatpush2.msra.mxu0 0.0
  %515 = vmatprep.subr.mxu0 0.0
  %516 = vmatpush2.msra.mxu0 0.0
  %517 = vmatprep.subr.mxu0 0.0
  %518 = vmatpush2.msra.mxu0 0.0
  %519 = vmatprep.subr.mxu0 0.0
  %520 = vmatpush2.msra.mxu0 0.0
  %521 = vmatprep.subr.mxu0 0.0
  %522 = vmatpush2.msra.mxu0 0.0
  %523 = vmatprep.subr.mxu0 0.0
  %524 = vmatpush2.msra.mxu0 0.0
  %525 = vmatprep.subr.mxu0 0.0
  %526 = vmatpush2.msra.mxu0 0.0
  %527 = vmatprep.mubr.f32.mxu0 0.0
  %528 = vmatmul.mubr.f32.gmra.mxu0 %v390
  %v529 = vpop.f32.mrf.mxu0
  %v530 = vadd.f32 0.0, %v529
  %v531 = vpop.f32.mrf.mxu0
  %v532 = vadd.f32 0.0, %v531
  %533 = vdwg.mxu0
  %v534 = vmax.f32 %v459, 0.0
  %v535 = vmax.f32 %v461, 0.0
  %v536 = vmax.f32 %v530, 0.0
  %v537 = vmax.f32 %v532, 0.0
  %v538 = vld [vmem:[%s2] sm:$0xf]
  %vm539 = vcmask 64512
  %v541 = vsel %vm539, %v538, 0
  %543 = vmatprep.subr.mxu0 0.0
  %544 = vmatpush1.msra.mxu0 0.0
  %545 = vmatprep.subr.mxu0 0.0
  %546 = vmatpush1.msra.mxu0 0.0
  %547 = vmatprep.subr.mxu0 0.0
  %548 = vmatpush1.msra.mxu0 0.0
  %549 = vmatprep.subr.mxu0 0.0
  %550 = vmatpush1.msra.mxu0 0.0
  %551 = vmatprep.subr.mxu0 0.0
  %552 = vmatpush1.msra.mxu0 0.0
  %553 = vmatprep.subr.mxu0 0.0
  %554 = vmatpush1.msra.mxu0 0.0
  %555 = vmatprep.subr.mxu0 0.0
  %556 = vmatpush1.msra.mxu0 0.0
  %557 = vmatprep.subr.mxu0 0.0
  %558 = vmatpush1.msra.mxu0 0.0
  %559 = vmatprep.subr.mxu0 0.0
  %560 = vmatpush1.msra.mxu0 0.0
  %561 = vmatprep.subr.mxu0 0.0
  %562 = vmatpush1.msra.mxu0 0.0
  %563 = vmatprep.subr.mxu0 0.0
  %564 = vmatpush1.msra.mxu0 0.0
  %565 = vmatprep.subr.mxu0 0.0
  %566 = vmatpush1.msra.mxu0 0.0
  %567 = vmatprep.subr.mxu0 0.0
  %568 = vmatpush1.msra.mxu0 0.0
  %569 = vmatprep.subr.mxu0 0.0
  %570 = vmatpush1.msra.mxu0 0.0
  %571 = vmatprep.subr.mxu0 0.0
  %572 = vmatpush1.msra.mxu0 0.0
  %573 = vmatprep.subr.mxu0 %v535
  %574 = vmatpush1.msra.mxu0 %v534
  %575 = vmatprep.subr.mxu0 0.0
  %576 = vmatpush2.msra.mxu0 0.0
  %577 = vmatprep.subr.mxu0 0.0
  %578 = vmatpush2.msra.mxu0 0.0
  %579 = vmatprep.subr.mxu0 0.0
  %580 = vmatpush2.msra.mxu0 0.0
  %581 = vmatprep.subr.mxu0 0.0
  %582 = vmatpush2.msra.mxu0 0.0
  %583 = vmatprep.subr.mxu0 0.0
  %584 = vmatpush2.msra.mxu0 0.0
  %585 = vmatprep.subr.mxu0 0.0
  %586 = vmatpush2.msra.mxu0 0.0
  %587 = vmatprep.subr.mxu0 0.0
  %588 = vmatpush2.msra.mxu0 0.0
  %589 = vmatprep.subr.mxu0 0.0
  %590 = vmatpush2.msra.mxu0 0.0
  %591 = vmatprep.subr.mxu0 0.0
  %592 = vmatpush2.msra.mxu0 0.0
  %593 = vmatprep.subr.mxu0 0.0
  %594 = vmatpush2.msra.mxu0 0.0
  %595 = vmatprep.subr.mxu0 0.0
  %596 = vmatpush2.msra.mxu0 0.0
  %597 = vmatprep.subr.mxu0 0.0
  %598 = vmatpush2.msra.mxu0 0.0
  %599 = vmatprep.subr.mxu0 0.0
  %600 = vmatpush2.msra.mxu0 0.0
  %601 = vmatprep.subr.mxu0 0.0
  %602 = vmatpush2.msra.mxu0 0.0
  %603 = vmatprep.subr.mxu0 0.0
  %604 = vmatpush2.msra.mxu0 0.0
  %605 = vmatprep.subr.mxu0 0.0
  %606 = vmatpush2.msra.mxu0 0.0
  %607 = vmatprep.mubr.f32.mxu0 0.0
  %608 = vmatmul.mubr.f32.gmra.mxu0 %v541
  %v609 = vpop.f32.mrf.mxu0
  %v610 = vadd.f32 0.0, %v609
  %v611 = vpop.f32.mrf.mxu0
  %v612 = vadd.f32 0.0, %v611
  %613 = vdwg.mxu0
  %614 = vmatprep.subr.mxu0 0.0
  %615 = vmatpush1.msra.mxu0 0.0
  %616 = vmatprep.subr.mxu0 0.0
  %617 = vmatpush1.msra.mxu0 0.0
  %618 = vmatprep.subr.mxu0 0.0
  %619 = vmatpush1.msra.mxu0 0.0
  %620 = vmatprep.subr.mxu0 0.0
  %621 = vmatpush1.msra.mxu0 0.0
  %622 = vmatprep.subr.mxu0 0.0
  %623 = vmatpush1.msra.mxu0 0.0
  %624 = vmatprep.subr.mxu0 0.0
  %625 = vmatpush1.msra.mxu0 0.0
  %626 = vmatprep.subr.mxu0 0.0
  %627 = vmatpush1.msra.mxu0 0.0
  %628 = vmatprep.subr.mxu0 0.0
  %629 = vmatpush1.msra.mxu0 0.0
  %630 = vmatprep.subr.mxu0 0.0
  %631 = vmatpush1.msra.mxu0 0.0
  %632 = vmatprep.subr.mxu0 0.0
  %633 = vmatpush1.msra.mxu0 0.0
  %634 = vmatprep.subr.mxu0 0.0
  %635 = vmatpush1.msra.mxu0 0.0
  %636 = vmatprep.subr.mxu0 0.0
  %637 = vmatpush1.msra.mxu0 0.0
  %638 = vmatprep.subr.mxu0 0.0
  %639 = vmatpush1.msra.mxu0 0.0
  %640 = vmatprep.subr.mxu0 0.0
  %641 = vmatpush1.msra.mxu0 0.0
  %642 = vmatprep.subr.mxu0 0.0
  %643 = vmatpush1.msra.mxu0 0.0
  %644 = vmatprep.subr.mxu0 %v537
  %645 = vmatpush1.msra.mxu0 %v536
  %646 = vmatprep.subr.mxu0 0.0
  %647 = vmatpush2.msra.mxu0 0.0
  %648 = vmatprep.subr.mxu0 0.0
  %649 = vmatpush2.msra.mxu0 0.0
  %650 = vmatprep.subr.mxu0 0.0
  %651 = vmatpush2.msra.mxu0 0.0
  %652 = vmatprep.subr.mxu0 0.0
  %653 = vmatpush2.msra.mxu0 0.0
  %654 = vmatprep.subr.mxu0 0.0
  %655 = vmatpush2.msra.mxu0 0.0
  %656 = vmatprep.subr.mxu0 0.0
  %657 = vmatpush2.msra.mxu0 0.0
  %658 = vmatprep.subr.mxu0 0.0
  %659 = vmatpush2.msra.mxu0 0.0
  %660 = vmatprep.subr.mxu0 0.0
  %661 = vmatpush2.msra.mxu0 0.0
  %662 = vmatprep.subr.mxu0 0.0
  %663 = vmatpush2.msra.mxu0 0.0
  %664 = vmatprep.subr.mxu0 0.0
  %665 = vmatpush2.msra.mxu0 0.0
  %666 = vmatprep.subr.mxu0 0.0
  %667 = vmatpush2.msra.mxu0 0.0
  %668 = vmatprep.subr.mxu0 0.0
  %669 = vmatpush2.msra.mxu0 0.0
  %670 = vmatprep.subr.mxu0 0.0
  %671 = vmatpush2.msra.mxu0 0.0
  %672 = vmatprep.subr.mxu0 0.0
  %673 = vmatpush2.msra.mxu0 0.0
  %674 = vmatprep.subr.mxu0 0.0
  %675 = vmatpush2.msra.mxu0 0.0
  %676 = vmatprep.subr.mxu0 0.0
  %677 = vmatpush2.msra.mxu0 0.0
  %678 = vmatprep.mubr.f32.mxu0 0.0
  %679 = vmatmul.mubr.f32.gmra.mxu0 %v541
  %v680 = vpop.f32.mrf.mxu0
  %v681 = vadd.f32 0.0, %v680
  %v682 = vpop.f32.mrf.mxu0
  %v683 = vadd.f32 0.0, %v682
  %684 = vdwg.mxu0
  %v689 = vcombine.low %v610, %v612
  %v690 = vcombine.low %v681, %v683
  %693 = vst [vmem:[%s3] sm:$0xff] %v689
  %694 = vst [vmem:[%s3 + $0x8] sm:$0xff] %v690
  // Predicated region
  $region14: #{color_feature_extractor.1} parent=0 // pred_check
    _
  $region15: #{color_feature_extractor.1} parent=0 // pred_check_branch
    %696 = sbr.rel (0) target = $region17
  $region16: #{color_feature_extractor.1} parent=0 // pred_region
    _
  $region17: #{color_feature_extractor.1} parent=0 // pred_fallthru
    _
  // Predicated region
  $region18: #{color_feature_extractor.1} parent=0 // pred_check
    _
  $region19: #{color_feature_extractor.1} parent=0 // pred_check_branch
    %698 = sbr.rel (0) target = $region21
  $region20: #{color_feature_extractor.1} parent=0 // pred_region
    _
  $region21: #{color_feature_extractor.1} parent=0 // pred_fallthru
    _

</llo_original>
